<compile_context>
chip_gen: v5e
topology: v5e:2x2
jax: 0.10.0
libtpu: 0.0.40
codegen_flags: <defaults>
</compile_context>

<pallas_src>
import functools

import jax
import jax.numpy as jnp
from jax.experimental import pallas as pl
from jax.experimental.pallas import tpu as pltpu


def _round_up(a, b):
    return (a + b - 1) // b * b


def _round_down(a, b):
    return a // b * b


def _vmem_capacity_bytes():
    try:
        info = pltpu.get_tpu_info()
        cap = getattr(info, "vmem_capacity_bytes", None)
        if cap:
            return int(cap)
    except Exception:
        pass
    return 64 * 1024 * 1024  # conservative default: v7x per-TC VMEM


# ---------------------------------------------------------------------------
# Kernels
# ---------------------------------------------------------------------------
def _frn_rowslab_kernel(eps_ref, x_ref, p_ref, o_ref, *, inv_hw, bf16_affine):
    """Single-pass FRN: full spatial extent resident per row tile.

    x_ref: (TR, HW) tile (last dim equals the full array dim, so the
    reduction is exact even when HW is not a multiple of 128).
    p_ref: (TR, 3) = [gamma | beta | tau] per row, f32.
    eps_ref: (1, 1) scalar in SMEM.
    """
    x = x_ref[...]
    xf = x.astype(jnp.float32)
    nu2 = jnp.sum(xf * xf, axis=-1, keepdims=True) * inv_hw       # (TR, 1)
    scale = jax.lax.rsqrt(nu2 + jnp.abs(eps_ref[0, 0]))           # (TR, 1)
    g = p_ref[:, 0:1]
    b = p_ref[:, 1:2]
    t = p_ref[:, 2:3]
    if bf16_affine:
        dt = jnp.bfloat16
        y = x.astype(dt) * scale.astype(dt)
        out = jnp.maximum(g.astype(dt) * y + b.astype(dt), t.astype(dt))
    else:
        out = jnp.maximum(g * (xf * scale) + b, t)
    o_ref[...] = out.astype(o_ref.dtype)


def _frn_sumsq_kernel(eps_ref, x_ref, d_ref, *, inv_hw, chunk_w, hw, ragged):
    """Chunked pass 1: accumulate sum(x^2) per row; emit nu2 + |eps|."""
    c = pl.program_id(1)

    @pl.when(c == 0)
    def _():
        d_ref[...] = jnp.zeros_like(d_ref)

    x = x_ref[...].astype(jnp.float32)
    xsq = x * x
    if ragged:
        # Mask out-of-range columns of the (clipped-DMA) last chunk so the
        # stale VMEM there does not bias the sum.
        col = c * chunk_w + jax.lax.broadcasted_iota(jnp.int32, x.shape, 1)
        xsq = jnp.where(col < hw, xsq, 0.0)
    d_ref[...] += jnp.sum(xsq, axis=-1, keepdims=True)

    @pl.when(c == pl.num_programs(1) - 1)
    def _():
        d_ref[...] = d_ref[...] * inv_hw + jnp.abs(eps_ref[0, 0])


def _frn_norm_kernel(x_ref, d_ref, p_ref, o_ref, *, bf16_affine):
    """Chunked pass 2: y = max(g * x * rsqrt(denom) + b, t)."""
    scale = jax.lax.rsqrt(d_ref[...])                             # (TR, 1)
    g = p_ref[:, 0:1]
    b = p_ref[:, 1:2]
    t = p_ref[:, 2:3]
    if bf16_affine:
        dt = jnp.bfloat16
        y = x_ref[...].astype(dt) * scale.astype(dt)
        out = jnp.maximum(g.astype(dt) * y + b.astype(dt), t.astype(dt))
    else:
        y = x_ref[...].astype(jnp.float32) * scale
        out = jnp.maximum(g * y + b, t)
    o_ref[...] = out.astype(o_ref.dtype)


# ---------------------------------------------------------------------------
# Wrapper
# ---------------------------------------------------------------------------
def filter_response_norm(x, gamma, beta, tau, eps, *, x_tile_bytes=None):
    """FRN forward.

    x:     (N, C, H, W)
    gamma: (1, C, 1, 1)
    beta:  (1, C, 1, 1)
    tau:   (1, C, 1, 1)
    eps:   (1,) scalar parameter (abs() taken inside the kernel)
    """
    N, C, H, W = x.shape
    NC, HW = N * C, H * W
    itemsize = jnp.dtype(x.dtype).itemsize
    bf16_affine = x.dtype == jnp.bfloat16

    # sublane granularity per dtype (f32: 8, bf16: 16, int8/fp8: 32)
    sub = 8 if itemsize >= 4 else (16 if itemsize == 2 else 32)

    vmem_cap = _vmem_capacity_bytes()
    big_vmem = vmem_cap >= 100 * 1024 * 1024        # v5e / v6e: 128 MiB
    if x_tile_bytes is None:
        x_tile_bytes = (4 if big_vmem else 2) * 1024 * 1024
    vmem_cap_limit = (80 if big_vmem else 44) * 1024 * 1024

    # 2-D views; reshapes of contiguous NCHW arrays are metadata-only.
    x2d = x.reshape(NC, HW)

    def rows(p):
        return jnp.broadcast_to(p.reshape(1, C), (N, C)).reshape(NC, 1)

    params = jnp.concatenate(
        [rows(gamma), rows(beta), rows(tau)], axis=1).astype(jnp.float32)
    eps2d = jnp.asarray(eps).reshape(1, 1).astype(jnp.float32)

    HW_ceil = _round_up(HW, 128)            # in-VMEM lane footprint per row
    row_bytes = HW_ceil * itemsize
    inv_hw = 1.0 / float(HW)

    if sub * row_bytes <= 2 * x_tile_bytes:
        # ------------- single pass: full row slab resident per tile ----------
        TR = max(sub, _round_down(x_tile_bytes // row_bytes, sub))
        TR = min(TR, _round_up(NC, sub))
        # Keep >= ~8 grid steps (pipeline steady state + both v7x TCs busy),
        # but never shrink a tile below ~512 KiB.
        while TR > sub and pl.cdiv(NC, TR) < 8:
            TR_next = max(sub, _round_down(TR // 2, sub))
            if TR_next == TR or TR_next * row_bytes < 512 * 1024:
                break
            TR = TR_next
        grid = (pl.cdiv(NC, TR),)

        # double-buffered in/out tiles + lane-padded (TR,128) f32 param bufs
        working = 2 * (2 * TR * HW_ceil * itemsize) + 2 * (TR * 128 * 4)
        vmem_limit = int(min(vmem_cap_limit,
                             max(32 * 1024 * 1024, working + (8 << 20))))

        out2d = pl.pallas_call(
            functools.partial(_frn_rowslab_kernel, inv_hw=inv_hw,
                              bf16_affine=bf16_affine),
            out_shape=jax.ShapeDtypeStruct((NC, HW), x.dtype),
            grid_spec=pltpu.PrefetchScalarGridSpec(
                num_scalar_prefetch=0,
                grid=grid,
                in_specs=[
                    pl.BlockSpec(memory_space=pltpu.MemorySpace.SMEM),  # eps
                    pl.BlockSpec((TR, HW), lambda i: (i, 0)),           # x rows
                    pl.BlockSpec((TR, 3), lambda i: (i, 0)),            # params
                ],
                out_specs=pl.BlockSpec((TR, HW), lambda i: (i, 0)),
            ),
            compiler_params=pltpu.CompilerParams(
                dimension_semantics=("parallel",),
                vmem_limit_bytes=vmem_limit,
            ),
        )(eps2d, x2d, params)
        return out2d.reshape(N, C, H, W)

    # ------------- two-pass: HW-chunked (very large spatial extents) ---------
    TR = sub
    CW = min(HW_ceil,
             max(128, _round_down(x_tile_bytes // (TR * itemsize), 128)))
    n_chunks = pl.cdiv(HW, CW)
    ragged = (HW % CW) != 0
    grid = (pl.cdiv(NC, TR), n_chunks)

    ws1 = 2 * (TR * CW * itemsize) + 2 * (TR * 128 * 4)
    vmem1 = int(min(vmem_cap_limit, max(32 * 1024 * 1024, ws1 + (8 << 20))))
    denom = pl.pallas_call(
        functools.partial(_frn_sumsq_kernel, inv_hw=inv_hw, chunk_w=CW,
                          hw=HW, ragged=ragged),
        out_shape=jax.ShapeDtypeStruct((NC, 1), jnp.float32),
        grid_spec=pltpu.PrefetchScalarGridSpec(
            num_scalar_prefetch=0,
            grid=grid,
            in_specs=[
                pl.BlockSpec(memory_space=pltpu.MemorySpace.SMEM),      # eps
                pl.BlockSpec((TR, CW), lambda i, c: (i, c)),            # x chunk
            ],
            out_specs=pl.BlockSpec((TR, 1), lambda i, c: (i, 0)),       # nu2+eps
        ),
        compiler_params=pltpu.CompilerParams(
            dimension_semantics=("parallel", "arbitrary"),
            vmem_limit_bytes=vmem1,
        ),
    )(eps2d, x2d)

    ws2 = 2 * (2 * TR * CW * itemsize) + 4 * (TR * 128 * 4)
    vmem2 = int(min(vmem_cap_limit, max(32 * 1024 * 1024, ws2 + (8 << 20))))
    out2d = pl.pallas_call(
        functools.partial(_frn_norm_kernel, bf16_affine=bf16_affine),
        out_shape=jax.ShapeDtypeStruct((NC, HW), x.dtype),
        grid_spec=pltpu.PrefetchScalarGridSpec(
            num_scalar_prefetch=0,
            grid=grid,
            in_specs=[
                pl.BlockSpec((TR, CW), lambda i, c: (i, c)),            # x chunk
                pl.BlockSpec((TR, 1), lambda i, c: (i, 0)),             # denom
                pl.BlockSpec((TR, 3), lambda i, c: (i, 0)),             # params
            ],
            out_specs=pl.BlockSpec((TR, CW), lambda i, c: (i, c)),
        ),
        compiler_params=pltpu.CompilerParams(
            dimension_semantics=("parallel", "parallel"),
            vmem_limit_bytes=vmem2,
        ),
    )(x2d, denom, params)
    return out2d.reshape(N, C, H, W)


def reference_frn(x, gamma, beta, tau, eps):
    xf = x.astype(jnp.float32)
    nu2 = jnp.mean(xf ** 2, axis=(2, 3), keepdims=True)
    xn = xf * jax.lax.rsqrt(nu2 + jnp.abs(eps))
    return jnp.maximum(gamma * xn + beta, tau)


if __name__ == "__main__":
    key = jax.random.PRNGKey(0)
    N, C, H, W = 2, 4, 16, 16
    x = jax.random.normal(key, (N, C, H, W), dtype=jnp.float32)

    # Deterministic parameter init matching reset_parameters():
    #   gamma = ones, beta = zeros, tau = zeros, eps = 1e-6 (non-learnable).
    gamma = jnp.ones((1, C, 1, 1), jnp.float32)
    beta = jnp.zeros((1, C, 1, 1), jnp.float32)
    tau = jnp.zeros((1, C, 1, 1), jnp.float32)
    eps = jnp.array([1e-6], jnp.float32)

    out = jax.block_until_ready(filter_response_norm(x, gamma, beta, tau, eps))
    ref = reference_frn(x, gamma, beta, tau, eps.reshape(1, 1, 1, 1))
    assert out.shape == (N, C, H, W)
    assert jnp.allclose(out, ref, atol=1e-5, rtol=1e-5)

    # Ragged path: HW % 128 != 0 and NC % 8 != 0, handled entirely in-kernel
    # (no wrapper-side pad/slice copies).
    N2, C2, H2, W2 = 3, 5, 7, 7
    x2 = jax.random.normal(jax.random.PRNGKey(1), (N2, C2, H2, W2), jnp.float32)
    g2 = jnp.ones((1, C2, 1, 1), jnp.float32)
    b2 = jnp.zeros((1, C2, 1, 1), jnp.float32)
    t2 = jnp.zeros((1, C2, 1, 1), jnp.float32)
    out2 = jax.block_until_ready(filter_response_norm(x2, g2, b2, t2, eps))
    ref2 = reference_frn(x2, g2, b2, t2, eps.reshape(1, 1, 1, 1))
    assert jnp.allclose(out2, ref2, atol=1e-5, rtol=1e-5)

    # Force the HW-chunked two-pass path (tiny tile budget) to exercise the
    # large-spatial fallback, including the ragged-chunk mask.
    N3, C3, H3, W3 = 2, 3, 20, 20
    x3 = jax.random.normal(jax.random.PRNGKey(2), (N3, C3, H3, W3), jnp.float32)
    g3 = 0.5 + jax.random.uniform(jax.random.PRNGKey(3), (1, C3, 1, 1))
    b3 = 0.1 * jax.random.normal(jax.random.PRNGKey(4), (1, C3, 1, 1))
    t3 = 0.1 * jax.random.normal(jax.random.PRNGKey(5), (1, C3, 1, 1))
    out3 = jax.block_until_ready(
        filter_response_norm(x3, g3, b3, t3, eps, x_tile_bytes=4096))
    ref3 = reference_frn(x3, g3, b3, t3, eps.reshape(1, 1, 1, 1))
    assert jnp.allclose(out3, ref3, atol=1e-5, rtol=1e-5)

    # bf16 fast path (affine/max in bf16, nu2 accumulation kept in f32).
    xb = x.astype(jnp.bfloat16)
    outb = jax.block_until_ready(
        filter_response_norm(xb, gamma, beta, tau, eps))
    refb = reference_frn(xb, gamma, beta, tau, eps.reshape(1, 1, 1, 1))
    assert outb.dtype == jnp.bfloat16
    assert jnp.allclose(outb.astype(jnp.float32), refb, atol=5e-2, rtol=5e-2)

    print("KERNEL_OK")
</pallas_src>

<mosaic_0001>
module attributes {stable_mosaic.version = 11 : i64} {
  func.func @_frn_rowslab_kernel(%arg0: i32, %arg1: memref<1x1xf32, #tpu.memory_space<smem>>, %arg2: memref<8x256xf32, #tpu.memory_space<vmem>>, %arg3: memref<8x3xf32, #tpu.memory_space<vmem>>, %arg4: memref<8x256xf32, #tpu.memory_space<vmem>>) attributes {dimension_semantics = [#tpu.dimension_semantics<parallel>], iteration_bounds = array<i64: 1>, scalar_prefetch = 0 : i64, scratch_operands = 0 : i64, tpu.core_type = #tpu.core_type<tc>, window_params = [{transform_indices = @transform_0, window_bounds = array<i64: 1, 1>}, {transform_indices = @transform_1, window_bounds = array<i64: 8, 256>}, {transform_indices = @transform_2, window_bounds = array<i64: 8, 3>}, {transform_indices = @transform_3, window_bounds = array<i64: 8, 256>}]} {
    %c0 = arith.constant 0 : index
    %c0_0 = arith.constant 0 : index
    %0 = vector.load %arg2[%c0, %c0_0] : memref<8x256xf32, #tpu.memory_space<vmem>>, vector<8x256xf32>
    %1 = arith.mulf %0, %0 : vector<8x256xf32>
    %cst = arith.constant dense<0.000000e+00> : vector<8xf32>
    %2 = vector.multi_reduction <add>, %1, %cst [1] : vector<8x256xf32> to vector<8xf32>
    %3 = vector.shape_cast %2 : vector<8xf32> to vector<8x1xf32>
    %cst_1 = arith.constant 3.906250e-03 : f32
    %4 = vector.broadcast %cst_1 : f32 to vector<8x1xf32>
    %5 = arith.mulf %3, %4 : vector<8x1xf32>
    %c0_2 = arith.constant 0 : index
    %c0_3 = arith.constant 0 : index
    %6 = memref.load %arg1[%c0_2, %c0_3] : memref<1x1xf32, #tpu.memory_space<smem>>
    %7 = math.absf %6 : f32
    %8 = vector.broadcast %7 : f32 to vector<8x1xf32>
    %9 = arith.addf %5, %8 : vector<8x1xf32>
    %10 = math.rsqrt %9 : vector<8x1xf32>
    %c0_4 = arith.constant 0 : index
    %c0_5 = arith.constant 0 : index
    %11 = vector.load %arg3[%c0_4, %c0_5] : memref<8x3xf32, #tpu.memory_space<vmem>>, vector<8x1xf32>
    %c0_6 = arith.constant 0 : index
    %c1 = arith.constant 1 : index
    %12 = vector.load %arg3[%c0_6, %c1] : memref<8x3xf32, #tpu.memory_space<vmem>>, vector<8x1xf32>
    %c0_7 = arith.constant 0 : index
    %c2 = arith.constant 2 : index
    %13 = vector.load %arg3[%c0_7, %c2] : memref<8x3xf32, #tpu.memory_space<vmem>>, vector<8x1xf32>
    %14 = vector.broadcast %10 : vector<8x1xf32> to vector<8x256xf32>
    %15 = arith.mulf %0, %14 : vector<8x256xf32>
    %16 = vector.broadcast %11 : vector<8x1xf32> to vector<8x256xf32>
    %17 = arith.mulf %16, %15 : vector<8x256xf32>
    %18 = vector.broadcast %12 : vector<8x1xf32> to vector<8x256xf32>
    %19 = arith.addf %17, %18 : vector<8x256xf32>
    %20 = vector.broadcast %13 : vector<8x1xf32> to vector<8x256xf32>
    %21 = arith.maximumf %19, %20 : vector<8x256xf32>
    %c0_8 = arith.constant 0 : index
    %c0_9 = arith.constant 0 : index
    %22 = vector.load %arg4[%c0_8, %c0_9] : memref<8x256xf32, #tpu.memory_space<vmem>>, vector<8x256xf32>
    tpu.vector_store %arg4[%c0_8, %c0_9], %21 {strides = array<i32>} : memref<8x256xf32, #tpu.memory_space<vmem>>, vector<8x256xf32>,
    return
  }
  func.func @transform_0(%arg0: i32) -> (i32, i32) {
    %c0_i32 = arith.constant 0 : i32
    %c0_i32_0 = arith.constant 0 : i32
    %c0_i32_1 = arith.constant 0 : i32
    return %c0_i32, %c0_i32_0 : i32, i32
  }
  func.func @transform_1(%arg0: i32) -> (i32, i32) {
    %c0_i32 = arith.constant 0 : i32
    %c0_i32_0 = arith.constant 0 : i32
    return %arg0, %c0_i32 : i32, i32
  }
  func.func @transform_2(%arg0: i32) -> (i32, i32) {
    %c0_i32 = arith.constant 0 : i32
    %c0_i32_0 = arith.constant 0 : i32
    return %arg0, %c0_i32 : i32, i32
  }
  func.func @transform_3(%arg0: i32) -> (i32, i32) {
    %c0_i32 = arith.constant 0 : i32
    %c0_i32_0 = arith.constant 0 : i32
    return %arg0, %c0_i32 : i32, i32
  }
}

</mosaic_0001>

<llo_original>
// kernel: tpu_custom_call.1
$region0: #{tpu_custom_call.1}
  #allocation0 [shape = 'u32[]', space=smem, size = 0x4, offset = 0x4, fixed_abs, tag = 'smem constant byte address 0x4 - core index']
  #allocation1 [shape = 'u32[72,128]{1,0:T(1,128)}', space=vmem, size = 0x9000, scoped, tag = 'internal scratch']
  #allocation2 [shape = 'f32[1,1]{1,0:T(1,128)S(6)}', space=smem, size = 0x200, scoped, tag = 'scoped memory for tpu_custom_call.1']
  %s0 = inlined_call_operand.<no memory space> [shape: f32[1,1], index: 0, kind: input, shape index: {}]
  %s1 = inlined_call_operand.hbm [shape: f32[8,256], index: 1, kind: input, shape index: {}]
  %s2 = inlined_call_operand.vmem [shape: f32[8,3], index: 2, kind: input, shape index: {}]
  %s3 = inlined_call_operand.hbm [shape: f32[8,256], index: 3, kind: output, shape index: {}]
  %s4 = sld [smem:[#allocation0]]
  $region26: #{tpu_custom_call.1} parent=0
    _
  %s6 = ssub.s32 1, %s4
  %s7 = scalar_select 0, %s6, %s4
  %8 = sst [smem:[#allocation2]] %s0
  $region1: #{tpu_custom_call.1} parent=0
    #allocation3 [shape = 'u8[8192]{0}', space=vmem, size = 0x2000, scoped, tag = 'input window, operand 1, single buffered']
    #allocation4 [shape = 's32[1]{0}', space=sflag, size = 0x4, scoped, tag = 'scoped memory for tpu_custom_call.1']
    #allocation5 [shape = 's32[1]{0}', space=sflag, size = 0x4, scoped, tag = 'scoped memory for tpu_custom_call.1']
    #allocation6 [shape = 'u8[8192]{0}', space=vmem, size = 0x2000, scoped, tag = 'output window, operand 0, single buffered']
    %9 = vsyncpa [#allocation4], 0
    %10 = vsyncpa [#allocation5], 0
    // Predicated region
    $region2: #{tpu_custom_call.1} parent=1 // pred_check
      _
    $region3: #{tpu_custom_call.1} parent=1 // pred_check_branch
      %12 = sbr.rel (0) target = $region5
    $region4: #{tpu_custom_call.1} parent=1 // pred_region
      _
    $region5: #{tpu_custom_call.1} parent=1 // pred_fallthru
      _
    // Predicated region
    $region6: #{tpu_custom_call.1} parent=1 // pred_check
      _
    $region7: #{tpu_custom_call.1} parent=1 // pred_check_branch
      %14 = sbr.rel (0) target = $region9
    $region8: #{tpu_custom_call.1} parent=1 // pred_region
      %16 = vsyncadd [#allocation4], 0
      %s18 = sshll.u32 %s1, 4
      %s19 = int_to_ptr.hbm [resolvable:$true] %s18
      %s20 = sshll.u32 [#allocation3], 4
      %s21 = int_to_ptr.vmem [resolvable:$true] %s20
      %23 = dma.hbm_to_vmem [thread:$0]  %s19, 256, %s21, [#allocation4]
    $region9: #{tpu_custom_call.1} parent=1 // pred_fallthru
      _
    // Predicated region
    $region10: #{tpu_custom_call.1} parent=1 // pred_check
      _
    $region11: #{tpu_custom_call.1} parent=1 // pred_check_branch
      %25 = sbr.rel (0) target = $region13
    $region12: #{tpu_custom_call.1} parent=1 // pred_region
      _
    $region13: #{tpu_custom_call.1} parent=1 // pred_fallthru
      _
    // Predicated region
    $region14: #{tpu_custom_call.1} parent=1 // pred_check
      _
    $region15: #{tpu_custom_call.1} parent=1 // pred_check_branch
      %27 = sbr.rel (0) target = $region17
    $region16: #{tpu_custom_call.1} parent=1 // pred_region
      %29 = dma.done [#allocation4], 256
    $region17: #{tpu_custom_call.1} parent=1 // pred_fallthru
      _
    %v30 = vld [vmem:[#allocation3] sm:$0xff]
    %v31 = vld [vmem:[#allocation3 + $0x8] sm:$0xff]
    %v32 = vmul.f32 %v30, %v30
    %v33 = vmul.f32 %v31, %v31
    %v34 = vadd.f32 %v32, %v33
    %35 = vadd.xlane.f32.xlu0 %v34
    %v36 = vpop.xlane.xlu0 %35
    %v37 = vmul.f32 %v36, 0.00390625
    %s38 = sld [smem:[#allocation2]]
    %s39 = sand.u32 2147483647, %s38
    %v40 = vstv %s39
    %v41 = vadd.f32 %v37, %v40
    %v42 = vrsqrt.pop %v41
    %v43 = vmul.f32 %v42, %v41
    %v44 = vmul.f32 %v43, %v42
    %v45 = vmul.f32 0.5, %v44
    %v46 = vsub.f32 1.5, %v45
    %v47 = vmul.f32 %v42, %v46
    %vm48 = vweird.f32 %v41
    %vm49 = vweird.f32 %v42
    %vm50 = vmor %vm48, %vm49
    %v51 = vsel %vm50, %v42, %v47
    %v52 = vld [vmem:[%s2] sm:$0xff]
    %v53 = vmul.f32 %v30, %v51
    %v54 = vmul.f32 %v31, %v51
    %56 = vset.pattern.permute.xlu0 0
    %57 = vperm.xlu0 %56, %v52
    %v58 = vpop.permute.xlu0 %57
    %v60 = vmul.f32 %v58, %v53
    %v61 = vmul.f32 %v58, %v54
    %62 = vset.pattern.permute.xlu0 1
    %63 = vperm.xlu0 %62, %v52
    %v64 = vpop.permute.xlu0 %63
    %v66 = vadd.f32 %v60, %v64
    %v67 = vadd.f32 %v61, %v64
    %68 = vset.pattern.permute.xlu0 2
    %69 = vperm.xlu0 %68, %v52
    %v70 = vpop.permute.xlu0 %69
    %v72 = vmax.f32 %v66, %v70
    %v73 = vmax.f32 %v67, %v70
    %74 = vst [vmem:[#allocation6] sm:$0xff] %v72
    %75 = vst [vmem:[#allocation6 + $0x8] sm:$0xff] %v73
    // Predicated region
    $region18: #{tpu_custom_call.1} parent=1 // pred_check
      _
    $region19: #{tpu_custom_call.1} parent=1 // pred_check_branch
      %77 = sbr.rel (0) target = $region21
    $region20: #{tpu_custom_call.1} parent=1 // pred_region
      %79 = vsyncadd [#allocation5], 0
      %s81 = sshll.u32 [#allocation6], 4
      %s82 = int_to_ptr.vmem [resolvable:$true] %s81
      %s83 = sshll.u32 %s3, 4
      %s84 = int_to_ptr.hbm [resolvable:$true] %s83
      %86 = dma.vmem_to_hbm [thread:$0]  %s82, 256, %s84, [#allocation5]
    $region21: #{tpu_custom_call.1} parent=1 // pred_fallthru
      _
    // Predicated region
    $region22: #{tpu_custom_call.1} parent=1 // pred_check
      _
    $region23: #{tpu_custom_call.1} parent=1 // pred_check_branch
      %88 = sbr.rel (0) target = $region25
    $region24: #{tpu_custom_call.1} parent=1 // pred_region
      %90 = dma.done [#allocation5], 256
    $region25: #{tpu_custom_call.1} parent=1 // pred_fallthru
      _
    %91 = vsyncpa [#allocation4], 1
    %92 = vsyncpa [#allocation5], 1

</llo_original>
